<compile_context>
chip_gen: v7x
topology: tpu7x:2x2x1
jax: 0.10.0
libtpu: 0.0.40
codegen_flags: <defaults>
</compile_context>

<pallas_src>
import functools

import jax
import jax.numpy as jnp
from jax import lax
from jax.experimental import pallas as pl
from jax.experimental.pallas import tpu as pltpu

_LANE = 128      # vreg lane width
_TA = 128        # anchors per grid step (full MXU width on v5e, lane-dense)
_BIG = 1e30      # finite "infinity" for arithmetic masking


def _round_up(x, m):
    return ((x + m - 1) // m) * m


def _pick_tile(n_pad, cap):
    """Largest of (cap, 512, 256, 128) that divides n_pad (mult. of 128)."""
    for t in (cap, 512, 256, 128):
        if t <= n_pad and n_pad % t == 0:
            return t
    return 128


def _triplet_loss_kernel(z_ref, lab_col_ref, lab_row_ref, sq_col_ref, sq_row_ref,
                         relu_ref, cnt_ref, prod_ref,
                         dpos_ref, dneg_ref,
                         *, margin, n, n_pad, ta, pc, unroll):
    b = pl.program_id(0)
    a0 = pl.multiple_of(b * ta, ta)            # first global anchor of this block

    # ---- anchor-invariant slices of the resident inputs (no extra DMAs) ------
    z_anc = z_ref[pl.ds(a0, ta), :]            # (ta, D)
    sq_anc = sq_row_ref[:, pl.ds(a0, ta)]      # (1, ta)   hoisted |z|^2
    lab_anc = lab_row_ref[:, pl.ds(a0, ta)]    # (1, ta)

    big = jnp.float32(_BIG)
    marg = jnp.float32(margin)

    # ---- phase 1: transposed, masked distance columns, built in row chunks ---
    #   dpos[j, a] = d(j, anchor a) + margin  if valid positive pair else -BIG
    #   dneg[j, a] = d(j, anchor a)           if valid negative pair else +BIG
    num_chunks = n_pad // pc

    def chunk_body(c, counts):
        ns_acc, nd_acc = counts
        r0 = pl.multiple_of(c * pc, pc)
        zc = z_ref[pl.ds(r0, pc), :]                                    # (pc, D)
        gram = lax.dot_general(zc, z_anc, (((1,), (1,)), ((), ())),
                               preferred_element_type=jnp.float32)      # (pc, ta)
        d2 = sq_col_ref[pl.ds(r0, pc), :] + sq_anc - 2.0 * gram
        d = jnp.sqrt(jnp.maximum(d2, 0.0))                              # (pc, ta)

        eq = lab_col_ref[pl.ds(r0, pc), :] == lab_anc                   # (pc, ta)
        rid = r0 + lax.broadcasted_iota(jnp.int32, (pc, ta), 0)         # candidate j
        cid = a0 + lax.broadcasted_iota(jnp.int32, (pc, ta), 1)         # anchor a
        valid = (rid < n) & (cid < n)
        same = valid & eq & (rid != cid)
        diff = valid & jnp.logical_not(eq)

        dpos_ref[pl.ds(r0, pc), :] = jnp.where(same, d + marg, -big)
        dneg_ref[pl.ds(r0, pc), :] = jnp.where(diff, d, big)

        ns_acc = ns_acc + jnp.sum(same.astype(jnp.int32), axis=0, keepdims=True)
        nd_acc = nd_acc + jnp.sum(diff.astype(jnp.int32), axis=0, keepdims=True)
        return ns_acc, nd_acc

    zero_row = jnp.zeros((1, ta), jnp.int32)
    n_same, n_diff = lax.fori_loop(0, num_chunks, chunk_body, (zero_row, zero_row))

    # ---- phase 2: O(N^3) triplet reduction with a vreg-resident working set --
    # For each positive p: broadcast its (1, ta) row over 8 sublanes and sweep
    # negatives 8 rows at a time.  Invalid / padded triplets are ~ -2e30 and
    # contribute nothing to either accumulator.
    num_ntiles = -(-n // 8)

    def p_body(p, carry):
        racc, cacc = carry
        dp = jnp.broadcast_to(dpos_ref[pl.ds(p, 1), :], (8, ta))        # (8, ta)

        def n_body(t, inner):
            r_acc, c_acc = inner
            n0 = pl.multiple_of(t * 8, 8)
            dn = dneg_ref[pl.ds(n0, 8), :]                              # (8, ta)
            l = dp - dn                                                 # (8, ta)
            r_acc = r_acc + jnp.maximum(l, 0.0)
            c_acc = c_acc + (l > 0.0).astype(jnp.int32)
            return r_acc, c_acc

        return lax.fori_loop(0, num_ntiles, n_body, (racc, cacc), unroll=unroll)

    racc, cacc = lax.fori_loop(
        0, n, p_body,
        (jnp.zeros((8, ta), jnp.float32), jnp.zeros((8, ta), jnp.int32)))

    # Lane-dense per-block partials; the single cross-lane reduce happens once,
    # in the wrapper, over all blocks.
    relu_ref[...] = racc[None]                       # (1, 8, ta) f32
    cnt_ref[...] = cacc[None]                        # (1, 8, ta) i32
    prod_ref[...] = (n_same * n_diff)[None]          # (1, 1, ta) i32  #pos*#neg


def triplet_loss(z, labels, margin=0.2):
    """Pallas TripletLoss forward. z: (N, D) float, labels: (N,) int.

    Returns (mean relu triplet loss over valid triplets, #triplets with loss>0).
    The loss is NaN when no valid triplet exists (matches torch `.mean()`).
    """
    n, d_feat = z.shape
    ta = _TA
    n_pad = _round_up(max(n, ta), ta)            # lane-dense, divisible by ta
    pc = _pick_tile(n_pad, 512)                  # row-chunk for the distance phase
    num_blocks = n_pad // ta
    num_ntiles = -(-n // 8)
    unroll = max(1, min(8, num_ntiles))

    zf = jnp.zeros((n_pad, d_feat), jnp.float32).at[:n].set(z.astype(jnp.float32))
    lab_col = jnp.zeros((n_pad, 1), jnp.int32).at[:n, 0].set(labels.astype(jnp.int32))
    lab_row = lab_col.reshape(1, n_pad)
    sq_col = jnp.sum(zf * zf, axis=1, keepdims=True)   # hoisted row norms (O(N*D) once)
    sq_row = sq_col.reshape(1, n_pad)

    kernel = functools.partial(
        _triplet_loss_kernel, margin=float(margin),
        n=n, n_pad=n_pad, ta=ta, pc=pc, unroll=unroll)

    # VMEM budget: resident z (pipeline-buffered), dpos/dneg scratch, small
    # label/norm rows, per-block output tiles + slack.  Modest floor so the
    # v5e 16 MiB scoped default is lifted; capped well under v7x's 64 MiB/TC
    # for these shapes.
    vmem_est = (2 * zf.nbytes + 2 * n_pad * ta * 4
                + 8 * n_pad * 4 + 8 * pc * ta * 4 + (2 << 20))
    vmem_limit = int(min(max(vmem_est, 32 << 20), 100 << 20))

    cost = pl.CostEstimate(
        flops=int(2 * num_blocks * n_pad * ta * d_feat          # gram matmuls
                  + 4 * num_blocks * n * num_ntiles * 8 * ta),  # triplet sweep
        transcendentals=int(num_blocks * n_pad * ta),           # sqrt
        bytes_accessed=int(zf.nbytes + 2 * num_blocks * n_pad * ta * 4),
    )

    relu_p, cnt_p, prod_p = pl.pallas_call(
        kernel,
        grid=(num_blocks,),
        in_specs=[
            pl.BlockSpec((n_pad, d_feat), lambda b: (0, 0)),   # z, resident
            pl.BlockSpec((n_pad, 1), lambda b: (0, 0)),        # labels (column)
            pl.BlockSpec((1, n_pad), lambda b: (0, 0)),        # labels (row)
            pl.BlockSpec((n_pad, 1), lambda b: (0, 0)),        # |z|^2 (column)
            pl.BlockSpec((1, n_pad), lambda b: (0, 0)),        # |z|^2 (row)
        ],
        out_specs=(
            pl.BlockSpec((1, 8, ta), lambda b: (b, 0, 0)),
            pl.BlockSpec((1, 8, ta), lambda b: (b, 0, 0)),
            pl.BlockSpec((1, 1, ta), lambda b: (b, 0, 0)),
        ),
        out_shape=(
            jax.ShapeDtypeStruct((num_blocks, 8, ta), jnp.float32),  # relu partials
            jax.ShapeDtypeStruct((num_blocks, 8, ta), jnp.int32),    # n_pos partials
            jax.ShapeDtypeStruct((num_blocks, 1, ta), jnp.int32),    # #pos*#neg per anchor
        ),
        scratch_shapes=[
            pltpu.VMEM((n_pad, ta), jnp.float32),   # dpos (transposed, masked)
            pltpu.VMEM((n_pad, ta), jnp.float32),   # dneg (transposed, masked)
        ],
        compiler_params=pltpu.CompilerParams(
            dimension_semantics=("parallel",),      # anchor blocks -> megacore
            vmem_limit_bytes=vmem_limit),
        cost_estimate=cost,
    )(zf, lab_col, lab_row, sq_col, sq_row)

    relu_sum = jnp.sum(relu_p)
    n_pos = jnp.sum(cnt_p)                       # int32 (exact per-block partials)
    n_valid = jnp.sum(prod_p.astype(jnp.float32))
    loss = relu_sum / n_valid                    # NaN if no valid triplets
    return loss, n_pos


def _reference(z, labels, margin=0.2):
    """Pure-JAX reference of the torch module for verification (small N only)."""
    z = z.astype(jnp.float32)
    sq = jnp.sum(z * z, axis=-1, keepdims=True)
    d = jnp.sqrt(jnp.maximum(sq + sq.T - 2.0 * (z @ z.T), 0.0))
    same_raw = labels[:, None] == labels[None, :]
    diff = ~same_raw
    same = same_raw & ~jnp.eye(z.shape[0], dtype=bool)
    L = d[:, :, None] - d[:, None, :] + margin
    mask = same[:, :, None] & diff[:, None, :]
    relu_sum = jnp.sum(jnp.where(mask, jnp.maximum(L, 0.0), 0.0))
    n_valid = jnp.sum(mask)
    n_pos = jnp.sum(mask & (L > 0.0))
    return relu_sum / n_valid, n_pos


if __name__ == "__main__":
    key = jax.random.PRNGKey(0)
    k1, k2 = jax.random.split(key)

    N, D = 8, 32
    z = jax.random.normal(k1, (N, D), dtype=jnp.float32)
    labels = jax.random.randint(k2, (N,), 0, 3, dtype=jnp.int32)

    loss, n_eg = triplet_loss(z, labels, margin=0.2)
    jax.block_until_ready((loss, n_eg))

    ref_loss, ref_n_eg = _reference(z, labels, margin=0.2)
    assert jnp.allclose(loss, ref_loss, rtol=1e-4, atol=1e-5), (loss, ref_loss)
    assert int(n_eg) == int(ref_n_eg), (n_eg, ref_n_eg)

    print("KERNEL_OK")
</pallas_src>

<mosaic_0001>
module attributes {stable_mosaic.version = 11 : i64} {
  func.func @_triplet_loss_kernel(%arg0: i32, %arg1: memref<128x32xf32, #tpu.memory_space<vmem>>, %arg2: memref<128x1xi32, #tpu.memory_space<vmem>>, %arg3: memref<1x128xi32, #tpu.memory_space<vmem>>, %arg4: memref<128x1xf32, #tpu.memory_space<vmem>>, %arg5: memref<1x128xf32, #tpu.memory_space<vmem>>, %arg6: memref<1x8x128xf32, #tpu.memory_space<vmem>>, %arg7: memref<1x8x128xi32, #tpu.memory_space<vmem>>, %arg8: memref<1x1x128xi32, #tpu.memory_space<vmem>>, %arg9: memref<128x128xf32, #tpu.memory_space<vmem>>, %arg10: memref<128x128xf32, #tpu.memory_space<vmem>>) attributes {dimension_semantics = [#tpu.dimension_semantics<parallel>], iteration_bounds = array<i64: 1>, scalar_prefetch = 0 : i64, scratch_operands = 2 : i64, tpu.core_type = #tpu.core_type<tc>, window_params = [{pipeline_mode = #tpu.pipeline_mode<synchronous>, transform_indices = @transform_0, window_bounds = array<i64: 128, 32>}, {pipeline_mode = #tpu.pipeline_mode<synchronous>, transform_indices = @transform_1, window_bounds = array<i64: 128, 1>}, {pipeline_mode = #tpu.pipeline_mode<synchronous>, transform_indices = @transform_2, window_bounds = array<i64: 1, 128>}, {pipeline_mode = #tpu.pipeline_mode<synchronous>, transform_indices = @transform_3, window_bounds = array<i64: 128, 1>}, {pipeline_mode = #tpu.pipeline_mode<synchronous>, transform_indices = @transform_4, window_bounds = array<i64: 1, 128>}, {transform_indices = @transform_5, window_bounds = array<i64: 1, 8, 128>}, {transform_indices = @transform_6, window_bounds = array<i64: 1, 8, 128>}, {transform_indices = @transform_7, window_bounds = array<i64: 1, 1, 128>}]} {
    %c128_i32 = arith.constant 128 : i32
    %0 = arith.muli %arg0, %c128_i32 : i32
    %1 = tpu.assume_multiple %0, 128 : i32
    %2 = arith.index_cast %1 : i32 to index
    %c0 = arith.constant 0 : index
    %3 = vector.load %arg1[%2, %c0] : memref<128x32xf32, #tpu.memory_space<vmem>>, vector<128x32xf32>
    %c0_0 = arith.constant 0 : index
    %4 = arith.index_cast %1 : i32 to index
    %5 = vector.load %arg5[%c0_0, %4] : memref<1x128xf32, #tpu.memory_space<vmem>>, vector<1x128xf32>
    %c0_1 = arith.constant 0 : index
    %6 = arith.index_cast %1 : i32 to index
    %7 = vector.load %arg3[%c0_1, %6] : memref<1x128xi32, #tpu.memory_space<vmem>>, vector<1x128xi32>
    %c0_i32 = arith.constant 0 : i32
    %8 = vector.broadcast %c0_i32 : i32 to vector<1x128xi32>
    %cst = arith.constant 2.000000e-01 : f32
    %cst_2 = arith.constant 1.000000e+30 : f32
    %c0_i32_3 = arith.constant 0 : i32
    %c128_i32_4 = arith.constant 128 : i32
    %9 = arith.muli %c0_i32_3, %c128_i32_4 : i32
    %10 = tpu.assume_multiple %9, 128 : i32
    %11 = arith.index_cast %10 : i32 to index
    %c0_5 = arith.constant 0 : index
    %12 = vector.load %arg1[%11, %c0_5] : memref<128x32xf32, #tpu.memory_space<vmem>>, vector<128x32xf32>
    %cst_6 = arith.constant dense<0.000000e+00> : vector<128x128xf32>
    %13 = tpu.matmul %12, %3, %cst_6 {dimension_numbers = #tpu.dot_dimension_numbers<[1], [1], [0], [0], [0, 0, 1, 0], [], []>} : vector<128x32xf32>, vector<128x32xf32>, vector<128x128xf32> -> vector<128x128xf32>
    %14 = arith.index_cast %10 : i32 to index
    %c0_7 = arith.constant 0 : index
    %15 = vector.load %arg4[%14, %c0_7] : memref<128x1xf32, #tpu.memory_space<vmem>>, vector<128x1xf32>
    %16 = vector.broadcast %15 : vector<128x1xf32> to vector<128x128xf32>
    %17 = vector.broadcast %5 : vector<1x128xf32> to vector<128x128xf32>
    %18 = arith.addf %16, %17 : vector<128x128xf32>
    %cst_8 = arith.constant 2.000000e+00 : f32
    %19 = vector.broadcast %cst_8 : f32 to vector<128x128xf32>
    %20 = arith.mulf %19, %13 : vector<128x128xf32>
    %21 = arith.subf %18, %20 : vector<128x128xf32>
    %cst_9 = arith.constant 0.000000e+00 : f32
    %22 = vector.broadcast %cst_9 : f32 to vector<128x128xf32>
    %23 = arith.maximumf %21, %22 : vector<128x128xf32>
    %24 = math.sqrt %23 : vector<128x128xf32>
    %25 = arith.index_cast %10 : i32 to index
    %c0_10 = arith.constant 0 : index
    %26 = vector.load %arg2[%25, %c0_10] : memref<128x1xi32, #tpu.memory_space<vmem>>, vector<128x1xi32>
    %27 = vector.broadcast %26 : vector<128x1xi32> to vector<128x128xi32>
    %28 = vector.broadcast %7 : vector<1x128xi32> to vector<128x128xi32>
    %29 = arith.cmpi eq, %27, %28 : vector<128x128xi32>
    %30 = tpu.iota {dimensions = array<i32: 0>} : vector<128x128xi32>
    %31 = vector.broadcast %10 : i32 to vector<128x128xi32>
    %32 = arith.addi %31, %30 : vector<128x128xi32>
    %33 = tpu.iota {dimensions = array<i32: 1>} : vector<128x128xi32>
    %34 = vector.broadcast %1 : i32 to vector<128x128xi32>
    %35 = arith.addi %34, %33 : vector<128x128xi32>
    %c8_i32 = arith.constant 8 : i32
    %36 = vector.broadcast %c8_i32 : i32 to vector<128x128xi32>
    %37 = arith.cmpi slt, %32, %36 : vector<128x128xi32>
    %c8_i32_11 = arith.constant 8 : i32
    %38 = vector.broadcast %c8_i32_11 : i32 to vector<128x128xi32>
    %39 = arith.cmpi slt, %35, %38 : vector<128x128xi32>
    %40 = arith.andi %37, %39 : vector<128x128xi1>
    %41 = arith.andi %40, %29 : vector<128x128xi1>
    %42 = arith.cmpi ne, %32, %35 : vector<128x128xi32>
    %43 = arith.andi %41, %42 : vector<128x128xi1>
    %cst_12 = arith.constant dense<true> : vector<128x128xi1>
    %44 = arith.xori %29, %cst_12 : vector<128x128xi1>
    %45 = arith.andi %40, %44 : vector<128x128xi1>
    %46 = vector.broadcast %cst : f32 to vector<128x128xf32>
    %47 = arith.addf %24, %46 : vector<128x128xf32>
    %cst_13 = arith.constant 0.000000e+00 : f32
    %48 = arith.subf %cst_13, %cst_2 : f32
    %49 = vector.broadcast %48 : f32 to vector<128x128xf32>
    %50 = arith.select %43, %47, %49 : vector<128x128xi1>, vector<128x128xf32>
    %51 = arith.index_cast %10 : i32 to index
    %c0_14 = arith.constant 0 : index
    %52 = vector.load %arg9[%51, %c0_14] : memref<128x128xf32, #tpu.memory_space<vmem>>, vector<128x128xf32>
    tpu.vector_store %arg9[%51, %c0_14], %50 {strides = array<i32>} : memref<128x128xf32, #tpu.memory_space<vmem>>, vector<128x128xf32>,
    %53 = vector.broadcast %cst_2 : f32 to vector<128x128xf32>
    %54 = arith.select %45, %24, %53 : vector<128x128xi1>, vector<128x128xf32>
    %55 = arith.index_cast %10 : i32 to index
    %c0_15 = arith.constant 0 : index
    %56 = vector.load %arg10[%55, %c0_15] : memref<128x128xf32, #tpu.memory_space<vmem>>, vector<128x128xf32>
    tpu.vector_store %arg10[%55, %c0_15], %54 {strides = array<i32>} : memref<128x128xf32, #tpu.memory_space<vmem>>, vector<128x128xf32>,
    %57 = arith.extui %43 : vector<128x128xi1> to vector<128x128xi32>
    %cst_16 = arith.constant dense<0> : vector<128xi32>
    %58 = vector.multi_reduction <add>, %57, %cst_16 [0] : vector<128x128xi32> to vector<128xi32>
    %59 = vector.shape_cast %58 : vector<128xi32> to vector<1x128xi32>
    %60 = arith.addi %8, %59 : vector<1x128xi32>
    %61 = arith.extui %45 : vector<128x128xi1> to vector<128x128xi32>
    %cst_17 = arith.constant dense<0> : vector<128xi32>
    %62 = vector.multi_reduction <add>, %61, %cst_17 [0] : vector<128x128xi32> to vector<128xi32>
    %63 = vector.shape_cast %62 : vector<128xi32> to vector<1x128xi32>
    %64 = arith.addi %8, %63 : vector<1x128xi32>
    %c1_i32 = arith.constant 1 : i32
    %cst_18 = arith.constant 0.000000e+00 : f32
    %65 = vector.broadcast %cst_18 : f32 to vector<8x128xf32>
    %c0_i32_19 = arith.constant 0 : i32
    %66 = vector.broadcast %c0_i32_19 : i32 to vector<8x128xi32>
    %c0_i32_20 = arith.constant 0 : i32
    %c8_i32_21 = arith.constant 8 : i32
    %67 = arith.addi %c0_i32_20, %c8_i32_21 : i32
    %c1_i32_22 = arith.constant 1 : i32
    %68:2 = scf.for %arg11 = %c0_i32_20 to %67 step %c1_i32_22 iter_args(%arg12 = %65, %arg13 = %66) -> (vector<8x128xf32>, vector<8x128xi32>)  : i32 {
      %76 = arith.index_cast %arg11 : i32 to index
      %c0_33 = arith.constant 0 : index
      %77 = vector.load %arg9[%76, %c0_33] : memref<128x128xf32, #tpu.memory_space<vmem>>, vector<1x128xf32>
      %78 = vector.shape_cast %77 : vector<1x128xf32> to vector<1x128xf32>
      %79 = vector.broadcast %78 : vector<1x128xf32> to vector<8x128xf32>
      %c0_i32_34 = arith.constant 0 : i32
      %c8_i32_35 = arith.constant 8 : i32
      %80 = arith.muli %c0_i32_34, %c8_i32_35 : i32
      %81 = tpu.assume_multiple %80, 8 : i32
      %82 = arith.index_cast %81 : i32 to index
      %c0_36 = arith.constant 0 : index
      %83 = vector.load %arg10[%82, %c0_36] : memref<128x128xf32, #tpu.memory_space<vmem>>, vector<8x128xf32>
      %84 = arith.subf %79, %83 : vector<8x128xf32>
      %cst_37 = arith.constant 0.000000e+00 : f32
      %85 = vector.broadcast %cst_37 : f32 to vector<8x128xf32>
      %86 = arith.maximumf %84, %85 : vector<8x128xf32>
      %87 = arith.addf %arg12, %86 : vector<8x128xf32>
      %cst_38 = arith.constant 0.000000e+00 : f32
      %88 = vector.broadcast %cst_38 : f32 to vector<8x128xf32>
      %89 = arith.cmpf ogt, %84, %88 : vector<8x128xf32>
      %90 = arith.extui %89 : vector<8x128xi1> to vector<8x128xi32>
      %91 = arith.addi %arg13, %90 : vector<8x128xi32>
      %c1_i32_39 = arith.constant 1 : i32
      scf.yield %87, %91 : vector<8x128xf32>, vector<8x128xi32>
    }
    %c8_i32_23 = arith.constant 8 : i32
    %69 = vector.shape_cast %68#0 : vector<8x128xf32> to vector<1x8x128xf32>
    %c0_24 = arith.constant 0 : index
    %c0_25 = arith.constant 0 : index
    %c0_26 = arith.constant 0 : index
    %70 = vector.load %arg6[%c0_24, %c0_25, %c0_26] : memref<1x8x128xf32, #tpu.memory_space<vmem>>, vector<1x8x128xf32>
    tpu.vector_store %arg6[%c0_24, %c0_25, %c0_26], %69 {strides = array<i32>} : memref<1x8x128xf32, #tpu.memory_space<vmem>>, vector<1x8x128xf32>,
    %71 = vector.shape_cast %68#1 : vector<8x128xi32> to vector<1x8x128xi32>
    %c0_27 = arith.constant 0 : index
    %c0_28 = arith.constant 0 : index
    %c0_29 = arith.constant 0 : index
    %72 = vector.load %arg7[%c0_27, %c0_28, %c0_29] : memref<1x8x128xi32, #tpu.memory_space<vmem>>, vector<1x8x128xi32>
    tpu.vector_store %arg7[%c0_27, %c0_28, %c0_29], %71 {strides = array<i32>} : memref<1x8x128xi32, #tpu.memory_space<vmem>>, vector<1x8x128xi32>,
    %73 = arith.muli %60, %64 : vector<1x128xi32>
    %74 = vector.shape_cast %73 : vector<1x128xi32> to vector<1x1x128xi32>
    %c0_30 = arith.constant 0 : index
    %c0_31 = arith.constant 0 : index
    %c0_32 = arith.constant 0 : index
    %75 = vector.load %arg8[%c0_30, %c0_31, %c0_32] : memref<1x1x128xi32, #tpu.memory_space<vmem>>, vector<1x1x128xi32>
    tpu.vector_store %arg8[%c0_30, %c0_31, %c0_32], %74 {strides = array<i32>} : memref<1x1x128xi32, #tpu.memory_space<vmem>>, vector<1x1x128xi32>,
    return
  }
  func.func @transform_0(%arg0: i32) -> (i32, i32) {
    %c0_i32 = arith.constant 0 : i32
    %c0_i32_0 = arith.constant 0 : i32
    %c0_i32_1 = arith.constant 0 : i32
    return %c0_i32, %c0_i32_0 : i32, i32
  }
  func.func @transform_1(%arg0: i32) -> (i32, i32) {
    %c0_i32 = arith.constant 0 : i32
    %c0_i32_0 = arith.constant 0 : i32
    %c0_i32_1 = arith.constant 0 : i32
    return %c0_i32, %c0_i32_0 : i32, i32
  }
  func.func @transform_2(%arg0: i32) -> (i32, i32) {
    %c0_i32 = arith.constant 0 : i32
    %c0_i32_0 = arith.constant 0 : i32
    %c0_i32_1 = arith.constant 0 : i32
    return %c0_i32, %c0_i32_0 : i32, i32
  }
  func.func @transform_3(%arg0: i32) -> (i32, i32) {
    %c0_i32 = arith.constant 0 : i32
    %c0_i32_0 = arith.constant 0 : i32
    %c0_i32_1 = arith.constant 0 : i32
    return %c0_i32, %c0_i32_0 : i32, i32
  }
  func.func @transform_4(%arg0: i32) -> (i32, i32) {
    %c0_i32 = arith.constant 0 : i32
    %c0_i32_0 = arith.constant 0 : i32
    %c0_i32_1 = arith.constant 0 : i32
    return %c0_i32, %c0_i32_0 : i32, i32
  }
  func.func @transform_5(%arg0: i32) -> (i32, i32, i32) {
    %c0_i32 = arith.constant 0 : i32
    %c0_i32_0 = arith.constant 0 : i32
    %c0_i32_1 = arith.constant 0 : i32
    return %arg0, %c0_i32, %c0_i32_0 : i32, i32, i32
  }
  func.func @transform_6(%arg0: i32) -> (i32, i32, i32) {
    %c0_i32 = arith.constant 0 : i32
    %c0_i32_0 = arith.constant 0 : i32
    %c0_i32_1 = arith.constant 0 : i32
    return %arg0, %c0_i32, %c0_i32_0 : i32, i32, i32
  }
  func.func @transform_7(%arg0: i32) -> (i32, i32, i32) {
    %c0_i32 = arith.constant 0 : i32
    %c0_i32_0 = arith.constant 0 : i32
    %c0_i32_1 = arith.constant 0 : i32
    return %arg0, %c0_i32, %c0_i32_0 : i32, i32, i32
  }
}

</mosaic_0001>

<llo_original>
// kernel: tpu_custom_call.1
$region0: #{tpu_custom_call.1}
  #allocation0 [shape = 'u32[]', space=smem, size = 0x4, offset = 0x4, fixed_abs, tag = 'smem constant byte address 0x4 - core index']
  #allocation1 [shape = 'u32[144,128]{1,0:T(1,128)}', space=vmem, size = 0x12000, scoped, tag = 'internal scratch']
  #allocation2 [shape = 'f32[128,128]{1,0:T(8,128)}', space=vmem, size = 0x10000, scoped, tag = 'scratch operand']
  #allocation3 [shape = 'f32[128,128]{1,0:T(8,128)}', space=vmem, size = 0x10000, scoped, tag = 'scratch operand']
  %s0 = inlined_call_operand.vmem [shape: f32[128,32], index: 0, kind: input, shape index: {}]
  %s1 = inlined_call_operand.vmem [shape: s32[128,1], index: 1, kind: input, shape index: {}]
  %s2 = inlined_call_operand.vmem [shape: s32[1,128], index: 2, kind: input, shape index: {}]
  %s3 = inlined_call_operand.vmem [shape: f32[128,1], index: 3, kind: input, shape index: {}]
  %s4 = inlined_call_operand.vmem [shape: f32[1,128], index: 4, kind: input, shape index: {}]
  %s5 = inlined_call_operand.hbm [shape: f32[1,8,128], index: 5, kind: output, shape index: {0}]
  %s6 = inlined_call_operand.hbm [shape: s32[1,8,128], index: 6, kind: output, shape index: {1}]
  %s7 = inlined_call_operand.hbm [shape: s32[1,1,128], index: 7, kind: output, shape index: {2}]
  %8 = xla_tuple %s5, %s6, %s7
  %s9 = sld [smem:[#allocation0]]
  $region53: #{tpu_custom_call.1} parent=0
    _
  %s11 = ssub.s32 1, %s9
  %s12 = scalar_select 0, %s11, %s9
  $region1: #{tpu_custom_call.1} parent=0
    #allocation4 [shape = 'u8[4096]{0}', space=vmem, size = 0x1000, scoped, tag = 'output window, operand 0, single buffered']
    #allocation5 [shape = 's32[1]{0}', space=sflag, size = 0x4, scoped, tag = 'scoped memory for tpu_custom_call.1']
    #allocation6 [shape = 'u8[4096]{0}', space=vmem, size = 0x1000, scoped, tag = 'output window, operand 1, single buffered']
    #allocation7 [shape = 's32[1]{0}', space=sflag, size = 0x4, scoped, tag = 'scoped memory for tpu_custom_call.1']
    #allocation8 [shape = 'u8[512]{0}', space=vmem, size = 0x400, scoped, tag = 'output window, operand 2, single buffered']
    %13 = vsyncpa [#allocation5], 0
    %14 = vsyncpa [#allocation7], 0
    // Predicated region
    $region2: #{tpu_custom_call.1} parent=1 // pred_check
      _
    $region3: #{tpu_custom_call.1} parent=1 // pred_check_branch
      %16 = sbr.rel (0) target = $region5
    $region4: #{tpu_custom_call.1} parent=1 // pred_region
      _
    $region5: #{tpu_custom_call.1} parent=1 // pred_fallthru
      _
    // Predicated region
    $region6: #{tpu_custom_call.1} parent=1 // pred_check
      _
    $region7: #{tpu_custom_call.1} parent=1 // pred_check_branch
      %18 = sbr.rel (0) target = $region9
    $region8: #{tpu_custom_call.1} parent=1 // pred_region
      _
    $region9: #{tpu_custom_call.1} parent=1 // pred_fallthru
      _
    // Predicated region
    $region10: #{tpu_custom_call.1} parent=1 // pred_check
      _
    $region11: #{tpu_custom_call.1} parent=1 // pred_check_branch
      %20 = sbr.rel (0) target = $region13
    $region12: #{tpu_custom_call.1} parent=1 // pred_region
      _
    $region13: #{tpu_custom_call.1} parent=1 // pred_fallthru
      _
    // Predicated region
    $region14: #{tpu_custom_call.1} parent=1 // pred_check
      _
    $region15: #{tpu_custom_call.1} parent=1 // pred_check_branch
      %22 = sbr.rel (0) target = $region17
    $region16: #{tpu_custom_call.1} parent=1 // pred_region
      _
    $region17: #{tpu_custom_call.1} parent=1 // pred_fallthru
      _
    // Predicated region
    $region18: #{tpu_custom_call.1} parent=1 // pred_check
      _
    $region19: #{tpu_custom_call.1} parent=1 // pred_check_branch
      %24 = sbr.rel (0) target = $region21
    $region20: #{tpu_custom_call.1} parent=1 // pred_region
      _
    $region21: #{tpu_custom_call.1} parent=1 // pred_fallthru
      _
    %s25 = smul.u32 0, 128
    %s26 = scalar_lea.vmem %s0, %s25
    %v27 = vld [vmem:[%s26] sm:$0xff]
    %v28 = vld [vmem:[%s26 + $0x8] sm:$0xff]
    %v29 = vld [vmem:[%s26 + $0x10] sm:$0xff]
    %v30 = vld [vmem:[%s26 + $0x18] sm:$0xff]
    %v31 = vld [vmem:[%s26 + $0x20] sm:$0xff]
    %v32 = vld [vmem:[%s26 + $0x28] sm:$0xff]
    %v33 = vld [vmem:[%s26 + $0x30] sm:$0xff]
    %v34 = vld [vmem:[%s26 + $0x38] sm:$0xff]
    %v35 = vld [vmem:[%s26 + $0x40] sm:$0xff]
    %v36 = vld [vmem:[%s26 + $0x48] sm:$0xff]
    %v37 = vld [vmem:[%s26 + $0x50] sm:$0xff]
    %v38 = vld [vmem:[%s26 + $0x58] sm:$0xff]
    %v39 = vld [vmem:[%s26 + $0x60] sm:$0xff]
    %v40 = vld [vmem:[%s26 + $0x68] sm:$0xff]
    %v41 = vld [vmem:[%s26 + $0x70] sm:$0xff]
    %v42 = vld [vmem:[%s26 + $0x78] sm:$0xff]
    %s43 = sshra.s32 %s25, 7
    %s44 = sand.u32 %s25, 127
    %s45 = scalar_lea.vmem %s4, %s43
    %v46 = vld [vmem:[%s45] sm:$0x1]
    %s47 = scalar_lea.vmem %s2, %s43
    %v48 = vld [vmem:[%s47] sm:$0x1]
    %v49 = vld [vmem:[%s0] sm:$0xff]
    %v50 = vld [vmem:[%s0 + $0x8] sm:$0xff]
    %v51 = vld [vmem:[%s0 + $0x10] sm:$0xff]
    %v52 = vld [vmem:[%s0 + $0x18] sm:$0xff]
    %v53 = vld [vmem:[%s0 + $0x20] sm:$0xff]
    %v54 = vld [vmem:[%s0 + $0x28] sm:$0xff]
    %v55 = vld [vmem:[%s0 + $0x30] sm:$0xff]
    %v56 = vld [vmem:[%s0 + $0x38] sm:$0xff]
    %v57 = vld [vmem:[%s0 + $0x40] sm:$0xff]
    %v58 = vld [vmem:[%s0 + $0x48] sm:$0xff]
    %v59 = vld [vmem:[%s0 + $0x50] sm:$0xff]
    %v60 = vld [vmem:[%s0 + $0x58] sm:$0xff]
    %v61 = vld [vmem:[%s0 + $0x60] sm:$0xff]
    %v62 = vld [vmem:[%s0 + $0x68] sm:$0xff]
    %v63 = vld [vmem:[%s0 + $0x70] sm:$0xff]
    %v64 = vld [vmem:[%s0 + $0x78] sm:$0xff]
    %vm65 = vcmask 261120
    %v67 = vsel %vm65, %v49, 0
    %v70 = vsel %vm65, %v50, 0
    %v73 = vsel %vm65, %v51, 0
    %v76 = vsel %vm65, %v52, 0
    %v79 = vsel %vm65, %v53, 0
    %v82 = vsel %vm65, %v54, 0
    %v85 = vsel %vm65, %v55, 0
    %v88 = vsel %vm65, %v56, 0
    %v91 = vsel %vm65, %v57, 0
    %v94 = vsel %vm65, %v58, 0
    %v97 = vsel %vm65, %v59, 0
    %v100 = vsel %vm65, %v60, 0
    %v103 = vsel %vm65, %v61, 0
    %v106 = vsel %vm65, %v62, 0
    %v109 = vsel %vm65, %v63, 0
    %v112 = vsel %vm65, %v64, 0
    %v115 = vsel %vm65, %v27, 0
    %v118 = vsel %vm65, %v28, 0
    %v121 = vsel %vm65, %v29, 0
    %v124 = vsel %vm65, %v30, 0
    %v127 = vsel %vm65, %v31, 0
    %v130 = vsel %vm65, %v32, 0
    %v133 = vsel %vm65, %v33, 0
    %v136 = vsel %vm65, %v34, 0
    %v139 = vsel %vm65, %v35, 0
    %v142 = vsel %vm65, %v36, 0
    %v145 = vsel %vm65, %v37, 0
    %v148 = vsel %vm65, %v38, 0
    %v151 = vsel %vm65, %v39, 0
    %v154 = vsel %vm65, %v40, 0
    %v157 = vsel %vm65, %v41, 0
    %v160 = vsel %vm65, %v42, 0
    %162 = vmatprep.subr.mxu0 0.0
    %163 = vmatpush1.xpose.msra.mxu0 %v115
    %164 = vmatprep.subr.mxu0 0.0
    %165 = vmatpush1.xpose.msra.mxu0 %v118
    %166 = vmatprep.subr.mxu0 0.0
    %167 = vmatpush1.xpose.msra.mxu0 %v121
    %168 = vmatprep.subr.mxu0 0.0
    %169 = vmatpush1.xpose.msra.mxu0 %v124
    %170 = vmatprep.subr.mxu0 0.0
    %171 = vmatpush1.xpose.msra.mxu0 %v127
    %172 = vmatprep.subr.mxu0 0.0
    %173 = vmatpush1.xpose.msra.mxu0 %v130
    %174 = vmatprep.subr.mxu0 0.0
    %175 = vmatpush1.xpose.msra.mxu0 %v133
    %176 = vmatprep.subr.mxu0 0.0
    %177 = vmatpush1.xpose.msra.mxu0 %v136
    %178 = vmatprep.subr.mxu0 0.0
    %179 = vmatpush1.xpose.msra.mxu0 %v139
    %180 = vmatprep.subr.mxu0 0.0
    %181 = vmatpush1.xpose.msra.mxu0 %v142
    %182 = vmatprep.subr.mxu0 0.0
    %183 = vmatpush1.xpose.msra.mxu0 %v145
    %184 = vmatprep.subr.mxu0 0.0
    %185 = vmatpush1.xpose.msra.mxu0 %v148
    %186 = vmatprep.subr.mxu0 0.0
    %187 = vmatpush1.xpose.msra.mxu0 %v151
    %188 = vmatprep.subr.mxu0 0.0
    %189 = vmatpush1.xpose.msra.mxu0 %v154
    %190 = vmatprep.subr.mxu0 0.0
    %191 = vmatpush1.xpose.msra.mxu0 %v157
    %192 = vmatprep.subr.mxu0 0.0
    %193 = vmatpush1.xpose.msra.mxu0 %v160
    %194 = vmatprep.subr.mxu0 0.0
    %195 = vmatpush1.xpose.msra.mxu0 0.0
    %196 = vmatprep.subr.mxu0 0.0
    %197 = vmatpush1.xpose.msra.mxu0 0.0
    %198 = vmatprep.subr.mxu0 0.0
    %199 = vmatpush1.xpose.msra.mxu0 0.0
    %200 = vmatprep.subr.mxu0 0.0
    %201 = vmatpush1.xpose.msra.mxu0 0.0
    %202 = vmatprep.subr.mxu0 0.0
    %203 = vmatpush1.xpose.msra.mxu0 0.0
    %204 = vmatprep.subr.mxu0 0.0
    %205 = vmatpush1.xpose.msra.mxu0 0.0
    %206 = vmatprep.subr.mxu0 0.0
    %207 = vmatpush1.xpose.msra.mxu0 0.0
    %208 = vmatprep.subr.mxu0 0.0
    %209 = vmatpush1.xpose.msra.mxu0 0.0
    %210 = vmatprep.subr.mxu0 0.0
    %211 = vmatpush1.xpose.msra.mxu0 0.0
    %212 = vmatprep.subr.mxu0 0.0
    %213 = vmatpush1.xpose.msra.mxu0 0.0
    %214 = vmatprep.subr.mxu0 0.0
    %215 = vmatpush1.xpose.msra.mxu0 0.0
    %216 = vmatprep.subr.mxu0 0.0
    %217 = vmatpush1.xpose.msra.mxu0 0.0
    %218 = vmatprep.subr.mxu0 0.0
    %219 = vmatpush1.xpose.msra.mxu0 0.0
    %220 = vmatprep.subr.mxu0 0.0
    %221 = vmatpush1.xpose.msra.mxu0 0.0
    %222 = vmatprep.subr.mxu0 0.0
    %223 = vmatpush1.xpose.msra.mxu0 0.0
    %224 = vmatprep.subr.mxu0 0.0
    %225 = vmatpush1.xpose.msra.mxu0 0.0
    %226 = vmatprep.mubr.f32.mxu0 0.0
    %227 = vmatmul.mubr.f32.gmra.mrb[0].mxu0 %v67
    %v228 = vpop.f32.mrb[0].mxu0
    %v229 = vadd.f32 0.0, %v228
    %v230 = vpop.f32.mrb[0].mxu0
    %231 = vmatprep.mubr.f32.mxu0 0.0
    %232 = vmatmul.mubr.f32.gmra.mrb[0].mxu0 %v70
    %v233 = vpop.f32.mrb[0].mxu0
    %v234 = vadd.f32 0.0, %v233
    %v235 = vpop.f32.mrb[0].mxu0
    %236 = vmatprep.mubr.f32.mxu0 0.0
    %237 = vmatmul.mubr.f32.gmra.mrb[0].mxu0 %v73
    %v238 = vpop.f32.mrb[0].mxu0
    %v239 = vadd.f32 0.0, %v238
    %v240 = vpop.f32.mrb[0].mxu0
    %241 = vmatprep.mubr.f32.mxu0 0.0
    %242 = vmatmul.mubr.f32.gmra.mrb[0].mxu0 %v76
    %v243 = vpop.f32.mrb[0].mxu0
    %v244 = vadd.f32 0.0, %v243
    %v245 = vpop.f32.mrb[0].mxu0
    %246 = vmatprep.mubr.f32.mxu0 0.0
    %247 = vmatmul.mubr.f32.gmra.mrb[0].mxu0 %v79
    %v248 = vpop.f32.mrb[0].mxu0
    %v249 = vadd.f32 0.0, %v248
    %v250 = vpop.f32.mrb[0].mxu0
    %251 = vmatprep.mubr.f32.mxu0 0.0
    %252 = vmatmul.mubr.f32.gmra.mrb[0].mxu0 %v82
    %v253 = vpop.f32.mrb[0].mxu0
    %v254 = vadd.f32 0.0, %v253
    %v255 = vpop.f32.mrb[0].mxu0
    %256 = vmatprep.mubr.f32.mxu0 0.0
    %257 = vmatmul.mubr.f32.gmra.mrb[0].mxu0 %v85
    %v258 = vpop.f32.mrb[0].mxu0
    %v259 = vadd.f32 0.0, %v258
    %v260 = vpop.f32.mrb[0].mxu0
    %261 = vmatprep.mubr.f32.mxu0 0.0
    %262 = vmatmul.mubr.f32.gmra.mrb[0].mxu0 %v88
    %v263 = vpop.f32.mrb[0].mxu0
    %v264 = vadd.f32 0.0, %v263
    %v265 = vpop.f32.mrb[0].mxu0
    %266 = vmatprep.mubr.f32.mxu0 0.0
    %267 = vmatmul.mubr.f32.gmra.mrb[0].mxu0 %v91
    %v268 = vpop.f32.mrb[0].mxu0
    %v269 = vadd.f32 0.0, %v268
    %v270 = vpop.f32.mrb[0].mxu0
    %271 = vmatprep.mubr.f32.mxu0 0.0
    %272 = vmatmul.mubr.f32.gmra.mrb[0].mxu0 %v94
    %v273 = vpop.f32.mrb[0].mxu0
    %v274 = vadd.f32 0.0, %v273
    %v275 = vpop.f32.mrb[0].mxu0
    %276 = vmatprep.mubr.f32.mxu0 0.0
    %277 = vmatmul.mubr.f32.gmra.mrb[0].mxu0 %v97
    %v278 = vpop.f32.mrb[0].mxu0
    %v279 = vadd.f32 0.0, %v278
    %v280 = vpop.f32.mrb[0].mxu0
    %281 = vmatprep.mubr.f32.mxu0 0.0
    %282 = vmatmul.mubr.f32.gmra.mrb[0].mxu0 %v100
    %v283 = vpop.f32.mrb[0].mxu0
    %v284 = vadd.f32 0.0, %v283
    %v285 = vpop.f32.mrb[0].mxu0
    %286 = vmatprep.mubr.f32.mxu0 0.0
    %287 = vmatmul.mubr.f32.gmra.mrb[0].mxu0 %v103
    %v288 = vpop.f32.mrb[0].mxu0
    %v289 = vadd.f32 0.0, %v288
    %v290 = vpop.f32.mrb[0].mxu0
    %291 = vmatprep.mubr.f32.mxu0 0.0
    %292 = vmatmul.mubr.f32.gmra.mrb[0].mxu0 %v106
    %v293 = vpop.f32.mrb[0].mxu0
    %v294 = vadd.f32 0.0, %v293
    %v295 = vpop.f32.mrb[0].mxu0
    %296 = vmatprep.mubr.f32.mxu0 0.0
    %297 = vmatmul.mubr.f32.gmra.mrb[0].mxu0 %v109
    %v298 = vpop.f32.mrb[0].mxu0
    %v299 = vadd.f32 0.0, %v298
    %v300 = vpop.f32.mrb[0].mxu0
    %301 = vmatprep.mubr.f32.mxu0 0.0
    %302 = vmatmul.mubr.f32.gmra.mrb[0].mxu0 %v112
    %v303 = vpop.f32.mrb[0].mxu0
    %v304 = vadd.f32 0.0, %v303
    %v305 = vpop.f32.mrb[0].mxu0
    %306 = vdwg.mxu0
    %v307 = vld [vmem:[%s3] sm:$0xff]
    %v308 = vld [vmem:[%s3 + $0x8] sm:$0xff]
    %v309 = vld [vmem:[%s3 + $0x10] sm:$0xff]
    %v310 = vld [vmem:[%s3 + $0x18] sm:$0xff]
    %v311 = vld [vmem:[%s3 + $0x20] sm:$0xff]
    %v312 = vld [vmem:[%s3 + $0x28] sm:$0xff]
    %v313 = vld [vmem:[%s3 + $0x30] sm:$0xff]
    %v314 = vld [vmem:[%s3 + $0x38] sm:$0xff]
    %v315 = vld [vmem:[%s3 + $0x40] sm:$0xff]
    %v316 = vld [vmem:[%s3 + $0x48] sm:$0xff]
    %v317 = vld [vmem:[%s3 + $0x50] sm:$0xff]
    %v318 = vld [vmem:[%s3 + $0x58] sm:$0xff]
    %v319 = vld [vmem:[%s3 + $0x60] sm:$0xff]
    %v320 = vld [vmem:[%s3 + $0x68] sm:$0xff]
    %v321 = vld [vmem:[%s3 + $0x70] sm:$0xff]
    %v322 = vld [vmem:[%s3 + $0x78] sm:$0xff]
    %324 = vset.pattern.permute.xlu0 0
    %325 = vperm.xlu0 %324, %v307
    %v326 = vpop.permute.xlu0 %325
    %329 = vset.pattern.permute.xlu0 0
    %330 = vperm.xlu0 %329, %v308
    %v331 = vpop.permute.xlu0 %330
    %334 = vset.pattern.permute.xlu0 0
    %335 = vperm.xlu0 %334, %v309
    %v336 = vpop.permute.xlu0 %335
    %339 = vset.pattern.permute.xlu0 0
    %340 = vperm.xlu0 %339, %v310
    %v341 = vpop.permute.xlu0 %340
    %344 = vset.pattern.permute.xlu0 0
    %345 = vperm.xlu0 %344, %v311
    %v346 = vpop.permute.xlu0 %345
    %349 = vset.pattern.permute.xlu0 0
    %350 = vperm.xlu0 %349, %v312
    %v351 = vpop.permute.xlu0 %350
    %354 = vset.pattern.permute.xlu0 0
    %355 = vperm.xlu0 %354, %v313
    %v356 = vpop.permute.xlu0 %355
    %359 = vset.pattern.permute.xlu0 0
    %360 = vperm.xlu0 %359, %v314
    %v361 = vpop.permute.xlu0 %360
    %364 = vset.pattern.permute.xlu0 0
    %365 = vperm.xlu0 %364, %v315
    %v366 = vpop.permute.xlu0 %365
    %369 = vset.pattern.permute.xlu0 0
    %370 = vperm.xlu0 %369, %v316
    %v371 = vpop.permute.xlu0 %370
    %374 = vset.pattern.permute.xlu0 0
    %375 = vperm.xlu0 %374, %v317
    %v376 = vpop.permute.xlu0 %375
    %379 = vset.pattern.permute.xlu0 0
    %380 = vperm.xlu0 %379, %v318
    %v381 = vpop.permute.xlu0 %380
    %384 = vset.pattern.permute.xlu0 0
    %385 = vperm.xlu0 %384, %v319
    %v386 = vpop.permute.xlu0 %385
    %389 = vset.pattern.permute.xlu0 0
    %390 = vperm.xlu0 %389, %v320
    %v391 = vpop.permute.xlu0 %390
    %394 = vset.pattern.permute.xlu0 0
    %395 = vperm.xlu0 %394, %v321
    %v396 = vpop.permute.xlu0 %395
    %399 = vset.pattern.permute.xlu0 0
    %400 = vperm.xlu0 %399, %v322
    %v401 = vpop.permute.xlu0 %400
    %v404 = vlaneseq
    %v405 = vshrl.u32 %v404, 7
    %v406 = vsub.s32 0, %v405
    %v407 = vrot.slane %v46, %v406
    %v409 = vadd.f32 %v326, %v407
    %v410 = vadd.f32 %v331, %v407
    %v411 = vadd.f32 %v336, %v407
    %v412 = vadd.f32 %v341, %v407
    %v413 = vadd.f32 %v346, %v407
    %v414 = vadd.f32 %v351, %v407
    %v415 = vadd.f32 %v356, %v407
    %v416 = vadd.f32 %v361, %v407
    %v417 = vadd.f32 %v366, %v407
    %v418 = vadd.f32 %v371, %v407
    %v419 = vadd.f32 %v376, %v407
    %v420 = vadd.f32 %v381, %v407
    %v421 = vadd.f32 %v386, %v407
    %v422 = vadd.f32 %v391, %v407
    %v423 = vadd.f32 %v396, %v407
    %v424 = vadd.f32 %v401, %v407
    %v425 = vmul.f32 %v229, 2.0
    %v426 = vmul.f32 %v234, 2.0
    %v427 = vmul.f32 %v239, 2.0
    %v428 = vmul.f32 %v244, 2.0
    %v429 = vmul.f32 %v249, 2.0
    %v430 = vmul.f32 %v254, 2.0
    %v431 = vmul.f32 %v259, 2.0
    %v432 = vmul.f32 %v264, 2.0
    %v433 = vmul.f32 %v269, 2.0
    %v434 = vmul.f32 %v274, 2.0
    %v435 = vmul.f32 %v279, 2.0
    %v436 = vmul.f32 %v284, 2.0
    %v437 = vmul.f32 %v289, 2.0
    %v438 = vmul.f32 %v294, 2.0
    %v439 = vmul.f32 %v299, 2.0
    %v440 = vmul.f32 %v304, 2.0
    %v441 = vsub.f32 %v409, %v425
    %v442 = vsub.f32 %v410, %v426
    %v443 = vsub.f32 %v411, %v427
    %v444 = vsub.f32 %v412, %v428
    %v445 = vsub.f32 %v413, %v429
    %v446 = vsub.f32 %v414, %v430
    %v447 = vsub.f32 %v415, %v431
    %v448 = vsub.f32 %v416, %v432
    %v449 = vsub.f32 %v417, %v433
    %v450 = vsub.f32 %v418, %v434
    %v451 = vsub.f32 %v419, %v435
    %v452 = vsub.f32 %v420, %v436
    %v453 = vsub.f32 %v421, %v437
    %v454 = vsub.f32 %v422, %v438
    %v455 = vsub.f32 %v423, %v439
    %v456 = vsub.f32 %v424, %v440
    %v457 = vmax.f32 %v441, 0.0
    %v458 = vmax.f32 %v442, 0.0
    %v459 = vmax.f32 %v443, 0.0
    %v460 = vmax.f32 %v444, 0.0
    %v461 = vmax.f32 %v445, 0.0
    %v462 = vmax.f32 %v446, 0.0
    %v463 = vmax.f32 %v447, 0.0
    %v464 = vmax.f32 %v448, 0.0
    %v465 = vmax.f32 %v449, 0.0
    %v466 = vmax.f32 %v450, 0.0
    %v467 = vmax.f32 %v451, 0.0
    %v468 = vmax.f32 %v452, 0.0
    %v469 = vmax.f32 %v453, 0.0
    %v470 = vmax.f32 %v454, 0.0
    %v471 = vmax.f32 %v455, 0.0
    %v472 = vmax.f32 %v456, 0.0
    %v473 = vrsqrt.pop %v457
    %v474 = vmul.f32 %v457, %v473
    %vm475 = vcmp.eq.f32.partialorder %v457, inf
    %v476 = vsel %vm475, %v457, %v474
    %vm477 = vcmp.eq.f32.partialorder %v457, 0.0
    %v478 = vand.u32 %v457, 2147483648
    %v479 = vsel %vm477, %v478, %v476
    %v480 = vrsqrt.pop %v458
    %v481 = vmul.f32 %v458, %v480
    %vm482 = vcmp.eq.f32.partialorder %v458, inf
    %v483 = vsel %vm482, %v458, %v481
    %vm484 = vcmp.eq.f32.partialorder %v458, 0.0
    %v485 = vand.u32 %v458, 2147483648
    %v486 = vsel %vm484, %v485, %v483
    %v487 = vrsqrt.pop %v459
    %v488 = vmul.f32 %v459, %v487
    %vm489 = vcmp.eq.f32.partialorder %v459, inf
    %v490 = vsel %vm489, %v459, %v488
    %vm491 = vcmp.eq.f32.partialorder %v459, 0.0
    %v492 = vand.u32 %v459, 2147483648
    %v493 = vsel %vm491, %v492, %v490
    %v494 = vrsqrt.pop %v460
    %v495 = vmul.f32 %v460, %v494
    %vm496 = vcmp.eq.f32.partialorder %v460, inf
    %v497 = vsel %vm496, %v460, %v495
    %vm498 = vcmp.eq.f32.partialorder %v460, 0.0
    %v499 = vand.u32 %v460, 2147483648
    %v500 = vsel %vm498, %v499, %v497
    %v501 = vrsqrt.pop %v461
    %v502 = vmul.f32 %v461, %v501
    %vm503 = vcmp.eq.f32.partialorder %v461, inf
    %v504 = vsel %vm503, %v461, %v502
    %vm505 = vcmp.eq.f32.partialorder %v461, 0.0
    %v506 = vand.u32 %v461, 2147483648
    %v507 = vsel %vm505, %v506, %v504
    %v508 = vrsqrt.pop %v462
    %v509 = vmul.f32 %v462, %v508
    %vm510 = vcmp.eq.f32.partialorder %v462, inf
    %v511 = vsel %vm510, %v462, %v509
    %vm512 = vcmp.eq.f32.partialorder %v462, 0.0
    %v513 = vand.u32 %v462, 2147483648
    %v514 = vsel %vm512, %v513, %v511
    %v515 = vrsqrt.pop %v463
    %v516 = vmul.f32 %v463, %v515
    %vm517 = vcmp.eq.f32.partialorder %v463, inf
    %v518 = vsel %vm517, %v463, %v516
    %vm519 = vcmp.eq.f32.partialorder %v463, 0.0
    %v520 = vand.u32 %v463, 2147483648
    %v521 = vsel %vm519, %v520, %v518
    %v522 = vrsqrt.pop %v464
    %v523 = vmul.f32 %v464, %v522
    %vm524 = vcmp.eq.f32.partialorder %v464, inf
    %v525 = vsel %vm524, %v464, %v523
    %vm526 = vcmp.eq.f32.partialorder %v464, 0.0
    %v527 = vand.u32 %v464, 2147483648
    %v528 = vsel %vm526, %v527, %v525
    %v529 = vrsqrt.pop %v465
    %v530 = vmul.f32 %v465, %v529
    %vm531 = vcmp.eq.f32.partialorder %v465, inf
    %v532 = vsel %vm531, %v465, %v530
    %vm533 = vcmp.eq.f32.partialorder %v465, 0.0
    %v534 = vand.u32 %v465, 2147483648
    %v535 = vsel %vm533, %v534, %v532
    %v536 = vrsqrt.pop %v466
    %v537 = vmul.f32 %v466, %v536
    %vm538 = vcmp.eq.f32.partialorder %v466, inf
    %v539 = vsel %vm538, %v466, %v537
    %vm540 = vcmp.eq.f32.partialorder %v466, 0.0
    %v541 = vand.u32 %v466, 2147483648
    %v542 = vsel %vm540, %v541, %v539
    %v543 = vrsqrt.pop %v467
    %v544 = vmul.f32 %v467, %v543
    %vm545 = vcmp.eq.f32.partialorder %v467, inf
    %v546 = vsel %vm545, %v467, %v544
    %vm547 = vcmp.eq.f32.partialorder %v467, 0.0
    %v548 = vand.u32 %v467, 2147483648
    %v549 = vsel %vm547, %v548, %v546
    %v550 = vrsqrt.pop %v468
    %v551 = vmul.f32 %v468, %v550
    %vm552 = vcmp.eq.f32.partialorder %v468, inf
    %v553 = vsel %vm552, %v468, %v551
    %vm554 = vcmp.eq.f32.partialorder %v468, 0.0
    %v555 = vand.u32 %v468, 2147483648
    %v556 = vsel %vm554, %v555, %v553
    %v557 = vrsqrt.pop %v469
    %v558 = vmul.f32 %v469, %v557
    %vm559 = vcmp.eq.f32.partialorder %v469, inf
    %v560 = vsel %vm559, %v469, %v558
    %vm561 = vcmp.eq.f32.partialorder %v469, 0.0
    %v562 = vand.u32 %v469, 2147483648
    %v563 = vsel %vm561, %v562, %v560
    %v564 = vrsqrt.pop %v470
    %v565 = vmul.f32 %v470, %v564
    %vm566 = vcmp.eq.f32.partialorder %v470, inf
    %v567 = vsel %vm566, %v470, %v565
    %vm568 = vcmp.eq.f32.partialorder %v470, 0.0
    %v569 = vand.u32 %v470, 2147483648
    %v570 = vsel %vm568, %v569, %v567
    %v571 = vrsqrt.pop %v471
    %v572 = vmul.f32 %v471, %v571
    %vm573 = vcmp.eq.f32.partialorder %v471, inf
    %v574 = vsel %vm573, %v471, %v572
    %vm575 = vcmp.eq.f32.partialorder %v471, 0.0
    %v576 = vand.u32 %v471, 2147483648
    %v577 = vsel %vm575, %v576, %v574
    %v578 = vrsqrt.pop %v472
    %v579 = vmul.f32 %v472, %v578
    %vm580 = vcmp.eq.f32.partialorder %v472, inf
    %v581 = vsel %vm580, %v472, %v579
    %vm582 = vcmp.eq.f32.partialorder %v472, 0.0
    %v583 = vand.u32 %v472, 2147483648
    %v584 = vsel %vm582, %v583, %v581
    %v585 = vld [vmem:[%s1] sm:$0xff]
    %v586 = vld [vmem:[%s1 + $0x8] sm:$0xff]
    %v587 = vld [vmem:[%s1 + $0x10] sm:$0xff]
    %v588 = vld [vmem:[%s1 + $0x18] sm:$0xff]
    %v589 = vld [vmem:[%s1 + $0x20] sm:$0xff]
    %v590 = vld [vmem:[%s1 + $0x28] sm:$0xff]
    %v591 = vld [vmem:[%s1 + $0x30] sm:$0xff]
    %v592 = vld [vmem:[%s1 + $0x38] sm:$0xff]
    %v593 = vld [vmem:[%s1 + $0x40] sm:$0xff]
    %v594 = vld [vmem:[%s1 + $0x48] sm:$0xff]
    %v595 = vld [vmem:[%s1 + $0x50] sm:$0xff]
    %v596 = vld [vmem:[%s1 + $0x58] sm:$0xff]
    %v597 = vld [vmem:[%s1 + $0x60] sm:$0xff]
    %v598 = vld [vmem:[%s1 + $0x68] sm:$0xff]
    %v599 = vld [vmem:[%s1 + $0x70] sm:$0xff]
    %v600 = vld [vmem:[%s1 + $0x78] sm:$0xff]
    %601 = vset.pattern.permute.xlu0 0
    %602 = vperm.xlu0 %601, %v585
    %v603 = vpop.permute.xlu0 %602
    %604 = vset.pattern.permute.xlu0 0
    %605 = vperm.xlu0 %604, %v586
    %v606 = vpop.permute.xlu0 %605
    %607 = vset.pattern.permute.xlu0 0
    %608 = vperm.xlu0 %607, %v587
    %v609 = vpop.permute.xlu0 %608
    %610 = vset.pattern.permute.xlu0 0
    %611 = vperm.xlu0 %610, %v588
    %v612 = vpop.permute.xlu0 %611
    %613 = vset.pattern.permute.xlu0 0
    %614 = vperm.xlu0 %613, %v589
    %v615 = vpop.permute.xlu0 %614
    %616 = vset.pattern.permute.xlu0 0
    %617 = vperm.xlu0 %616, %v590
    %v618 = vpop.permute.xlu0 %617
    %619 = vset.pattern.permute.xlu0 0
    %620 = vperm.xlu0 %619, %v591
    %v621 = vpop.permute.xlu0 %620
    %622 = vset.pattern.permute.xlu0 0
    %623 = vperm.xlu0 %622, %v592
    %v624 = vpop.permute.xlu0 %623
    %625 = vset.pattern.permute.xlu0 0
    %626 = vperm.xlu0 %625, %v593
    %v627 = vpop.permute.xlu0 %626
    %628 = vset.pattern.permute.xlu0 0
    %629 = vperm.xlu0 %628, %v594
    %v630 = vpop.permute.xlu0 %629
    %631 = vset.pattern.permute.xlu0 0
    %632 = vperm.xlu0 %631, %v595
    %v633 = vpop.permute.xlu0 %632
    %634 = vset.pattern.permute.xlu0 0
    %635 = vperm.xlu0 %634, %v596
    %v636 = vpop.permute.xlu0 %635
    %637 = vset.pattern.permute.xlu0 0
    %638 = vperm.xlu0 %637, %v597
    %v639 = vpop.permute.xlu0 %638
    %640 = vset.pattern.permute.xlu0 0
    %641 = vperm.xlu0 %640, %v598
    %v642 = vpop.permute.xlu0 %641
    %643 = vset.pattern.permute.xlu0 0
    %644 = vperm.xlu0 %643, %v599
    %v645 = vpop.permute.xlu0 %644
    %646 = vset.pattern.permute.xlu0 0
    %647 = vperm.xlu0 %646, %v600
    %v648 = vpop.permute.xlu0 %647
    %v649 = vlaneseq
    %v650 = vshrl.u32 %v649, 7
    %v651 = vsub.s32 0, %v650
    %v652 = vrot.slane %v48, %v651
    %vm653 = vcmp.eq.s32.totalorder %v603, %v652
    %vm654 = vcmp.eq.s32.totalorder %v606, %v652
    %vm655 = vcmp.eq.s32.totalorder %v609, %v652
    %vm656 = vcmp.eq.s32.totalorder %v612, %v652
    %vm657 = vcmp.eq.s32.totalorder %v615, %v652
    %vm658 = vcmp.eq.s32.totalorder %v618, %v652
    %vm659 = vcmp.eq.s32.totalorder %v621, %v652
    %vm660 = vcmp.eq.s32.totalorder %v624, %v652
    %vm661 = vcmp.eq.s32.totalorder %v627, %v652
    %vm662 = vcmp.eq.s32.totalorder %v630, %v652
    %vm663 = vcmp.eq.s32.totalorder %v633, %v652
    %vm664 = vcmp.eq.s32.totalorder %v636, %v652
    %vm665 = vcmp.eq.s32.totalorder %v639, %v652
    %vm666 = vcmp.eq.s32.totalorder %v642, %v652
    %vm667 = vcmp.eq.s32.totalorder %v645, %v652
    %vm668 = vcmp.eq.s32.totalorder %v648, %v652
    %v669 = vlaneseq
    %v670 = vshrl.u32 %v669, 7
    %v671 = vadd.s32 %v670, 8
    %v672 = vadd.s32 %v670, 16
    %v673 = vadd.s32 %v670, 24
    %v674 = vadd.s32 %v670, 32
    %v675 = vadd.s32 %v670, 40
    %v676 = vadd.s32 %v670, 48
    %v677 = vadd.s32 %v670, 56
    %v678 = vadd.s32 %v670, 64
    %v679 = vadd.s32 %v670, 72
    %v680 = vadd.s32 %v670, 80
    %v681 = vadd.s32 %v670, 88
    %v682 = vadd.s32 %v670, 96
    %v683 = vadd.s32 %v670, 104
    %v684 = vadd.s32 %v670, 112
    %v685 = vadd.s32 %v670, 120
    %v686 = vstv 0
    %v687 = vadd.s32 %v686, %v670
    %v688 = vadd.s32 %v686, %v671
    %v689 = vadd.s32 %v686, %v672
    %v690 = vadd.s32 %v686, %v673
    %v691 = vadd.s32 %v686, %v674
    %v692 = vadd.s32 %v686, %v675
    %v693 = vadd.s32 %v686, %v676
    %v694 = vadd.s32 %v686, %v677
    %v695 = vadd.s32 %v686, %v678
    %v696 = vadd.s32 %v686, %v679
    %v697 = vadd.s32 %v686, %v680
    %v698 = vadd.s32 %v686, %v681
    %v699 = vadd.s32 %v686, %v682
    %v700 = vadd.s32 %v686, %v683
    %v701 = vadd.s32 %v686, %v684
    %v702 = vadd.s32 %v686, %v685
    %v703 = vlaneseq
    %v704 = vand.u32 %v703, 127
    %v705 = vstv %s25
    %v706 = vadd.s32 %v705, %v704
    %vm707 = vcmp.lt.s32.totalorder %v687, 8
    %vm708 = vcmp.lt.s32.totalorder %v688, 8
    %vm709 = vcmp.lt.s32.totalorder %v689, 8
    %vm710 = vcmp.lt.s32.totalorder %v690, 8
    %vm711 = vcmp.lt.s32.totalorder %v691, 8
    %vm712 = vcmp.lt.s32.totalorder %v692, 8
    %vm713 = vcmp.lt.s32.totalorder %v693, 8
    %vm714 = vcmp.lt.s32.totalorder %v694, 8
    %vm715 = vcmp.lt.s32.totalorder %v695, 8
    %vm716 = vcmp.lt.s32.totalorder %v696, 8
    %vm717 = vcmp.lt.s32.totalorder %v697, 8
    %vm718 = vcmp.lt.s32.totalorder %v698, 8
    %vm719 = vcmp.lt.s32.totalorder %v699, 8
    %vm720 = vcmp.lt.s32.totalorder %v700, 8
    %vm721 = vcmp.lt.s32.totalorder %v701, 8
    %vm722 = vcmp.lt.s32.totalorder %v702, 8
    %vm723 = vcmp.lt.s32.totalorder %v706, 8
    %vm724 = vmand %vm707, %vm723
    %vm725 = vmand %vm708, %vm723
    %vm726 = vmand %vm709, %vm723
    %vm727 = vmand %vm710, %vm723
    %vm728 = vmand %vm711, %vm723
    %vm729 = vmand %vm712, %vm723
    %vm730 = vmand %vm713, %vm723
    %vm731 = vmand %vm714, %vm723
    %vm732 = vmand %vm715, %vm723
    %vm733 = vmand %vm716, %vm723
    %vm734 = vmand %vm717, %vm723
    %vm735 = vmand %vm718, %vm723
    %vm736 = vmand %vm719, %vm723
    %vm737 = vmand %vm720, %vm723
    %vm738 = vmand %vm721, %vm723
    %vm739 = vmand %vm722, %vm723
    %vm740 = vmand %vm724, %vm653
    %vm741 = vmand %vm725, %vm654
    %vm742 = vmand %vm726, %vm655
    %vm743 = vmand %vm727, %vm656
    %vm744 = vmand %vm728, %vm657
    %vm745 = vmand %vm729, %vm658
    %vm746 = vmand %vm730, %vm659
    %vm747 = vmand %vm731, %vm660
    %vm748 = vmand %vm732, %vm661
    %vm749 = vmand %vm733, %vm662
    %vm750 = vmand %vm734, %vm663
    %vm751 = vmand %vm735, %vm664
    %vm752 = vmand %vm736, %vm665
    %vm753 = vmand %vm737, %vm666
    %vm754 = vmand %vm738, %vm667
    %vm755 = vmand %vm739, %vm668
    %vm756 = vcmp.ne.s32.totalorder %v687, %v706
    %vm757 = vcmp.ne.s32.totalorder %v688, %v706
    %vm758 = vcmp.ne.s32.totalorder %v689, %v706
    %vm759 = vcmp.ne.s32.totalorder %v690, %v706
    %vm760 = vcmp.ne.s32.totalorder %v691, %v706
    %vm761 = vcmp.ne.s32.totalorder %v692, %v706
    %vm762 = vcmp.ne.s32.totalorder %v693, %v706
    %vm763 = vcmp.ne.s32.totalorder %v694, %v706
    %vm764 = vcmp.ne.s32.totalorder %v695, %v706
    %vm765 = vcmp.ne.s32.totalorder %v696, %v706
    %vm766 = vcmp.ne.s32.totalorder %v697, %v706
    %vm767 = vcmp.ne.s32.totalorder %v698, %v706
    %vm768 = vcmp.ne.s32.totalorder %v699, %v706
    %vm769 = vcmp.ne.s32.totalorder %v700, %v706
    %vm770 = vcmp.ne.s32.totalorder %v701, %v706
    %vm771 = vcmp.ne.s32.totalorder %v702, %v706
    %vm772 = vmand %vm740, %vm756
    %vm773 = vmand %vm741, %vm757
    %vm774 = vmand %vm742, %vm758
    %vm775 = vmand %vm743, %vm759
    %vm776 = vmand %vm744, %vm760
    %vm777 = vmand %vm745, %vm761
    %vm778 = vmand %vm746, %vm762
    %vm779 = vmand %vm747, %vm763
    %vm780 = vmand %vm748, %vm764
    %vm781 = vmand %vm749, %vm765
    %vm782 = vmand %vm750, %vm766
    %vm783 = vmand %vm751, %vm767
    %vm784 = vmand %vm752, %vm768
    %vm785 = vmand %vm753, %vm769
    %vm786 = vmand %vm754, %vm770
    %vm787 = vmand %vm755, %vm771
    %vm788 = vmxor %vm653, 1
    %vm789 = vmxor %vm654, 1
    %vm790 = vmxor %vm655, 1
    %vm791 = vmxor %vm656, 1
    %vm792 = vmxor %vm657, 1
    %vm793 = vmxor %vm658, 1
    %vm794 = vmxor %vm659, 1
    %vm795 = vmxor %vm660, 1
    %vm796 = vmxor %vm661, 1
    %vm797 = vmxor %vm662, 1
    %vm798 = vmxor %vm663, 1
    %vm799 = vmxor %vm664, 1
    %vm800 = vmxor %vm665, 1
    %vm801 = vmxor %vm666, 1
    %vm802 = vmxor %vm667, 1
    %vm803 = vmxor %vm668, 1
    %vm804 = vmand %vm724, %vm788
    %vm805 = vmand %vm725, %vm789
    %vm806 = vmand %vm726, %vm790
    %vm807 = vmand %vm727, %vm791
    %vm808 = vmand %vm728, %vm792
    %vm809 = vmand %vm729, %vm793
    %vm810 = vmand %vm730, %vm794
    %vm811 = vmand %vm731, %vm795
    %vm812 = vmand %vm732, %vm796
    %vm813 = vmand %vm733, %vm797
    %vm814 = vmand %vm734, %vm798
    %vm815 = vmand %vm735, %vm799
    %vm816 = vmand %vm736, %vm800
    %vm817 = vmand %vm737, %vm801
    %vm818 = vmand %vm738, %vm802
    %vm819 = vmand %vm739, %vm803
    %v820 = vadd.f32 %v479, 0.2
    %v821 = vadd.f32 %v486, 0.2
    %v822 = vadd.f32 %v493, 0.2
    %v823 = vadd.f32 %v500, 0.2
    %v824 = vadd.f32 %v507, 0.2
    %v825 = vadd.f32 %v514, 0.2
    %v826 = vadd.f32 %v521, 0.2
    %v827 = vadd.f32 %v528, 0.2
    %v828 = vadd.f32 %v535, 0.2
    %v829 = vadd.f32 %v542, 0.2
    %v830 = vadd.f32 %v549, 0.2
    %v831 = vadd.f32 %v556, 0.2
    %v832 = vadd.f32 %v563, 0.2
    %v833 = vadd.f32 %v570, 0.2
    %v834 = vadd.f32 %v577, 0.2
    %v835 = vadd.f32 %v584, 0.2
    %v836 = vsel %vm772, %v820, -1e+30
    %v837 = vsel %vm773, %v821, -1e+30
    %v838 = vsel %vm774, %v822, -1e+30
    %v839 = vsel %vm775, %v823, -1e+30
    %v840 = vsel %vm776, %v824, -1e+30
    %v841 = vsel %vm777, %v825, -1e+30
    %v842 = vsel %vm778, %v826, -1e+30
    %v843 = vsel %vm779, %v827, -1e+30
    %v844 = vsel %vm780, %v828, -1e+30
    %v845 = vsel %vm781, %v829, -1e+30
    %v846 = vsel %vm782, %v830, -1e+30
    %v847 = vsel %vm783, %v831, -1e+30
    %v848 = vsel %vm784, %v832, -1e+30
    %v849 = vsel %vm785, %v833, -1e+30
    %v850 = vsel %vm786, %v834, -1e+30
    %v851 = vsel %vm787, %v835, -1e+30
    %852 = vst [vmem:[#allocation2] sm:$0xff] %v836
    %853 = vst [vmem:[#allocation2 + $0x8] sm:$0xff] %v837
    %854 = vst [vmem:[#allocation2 + $0x10] sm:$0xff] %v838
    %855 = vst [vmem:[#allocation2 + $0x18] sm:$0xff] %v839
    %856 = vst [vmem:[#allocation2 + $0x20] sm:$0xff] %v840
    %857 = vst [vmem:[#allocation2 + $0x28] sm:$0xff] %v841
    %858 = vst [vmem:[#allocation2 + $0x30] sm:$0xff] %v842
    %859 = vst [vmem:[#allocation2 + $0x38] sm:$0xff] %v843
    %860 = vst [vmem:[#allocation2 + $0x40] sm:$0xff] %v844
    %861 = vst [vmem:[#allocation2 + $0x48] sm:$0xff] %v845
    %862 = vst [vmem:[#allocation2 + $0x50] sm:$0xff] %v846
    %863 = vst [vmem:[#allocation2 + $0x58] sm:$0xff] %v847
    %864 = vst [vmem:[#allocation2 + $0x60] sm:$0xff] %v848
    %865 = vst [vmem:[#allocation2 + $0x68] sm:$0xff] %v849
    %866 = vst [vmem:[#allocation2 + $0x70] sm:$0xff] %v850
    %867 = vst [vmem:[#allocation2 + $0x78] sm:$0xff] %v851
    %v868 = vsel %vm804, %v479, 1e+30
    %v869 = vsel %vm805, %v486, 1e+30
    %v870 = vsel %vm806, %v493, 1e+30
    %v871 = vsel %vm807, %v500, 1e+30
    %v872 = vsel %vm808, %v507, 1e+30
    %v873 = vsel %vm809, %v514, 1e+30
    %v874 = vsel %vm810, %v521, 1e+30
    %v875 = vsel %vm811, %v528, 1e+30
    %v876 = vsel %vm812, %v535, 1e+30
    %v877 = vsel %vm813, %v542, 1e+30
    %v878 = vsel %vm814, %v549, 1e+30
    %v879 = vsel %vm815, %v556, 1e+30
    %v880 = vsel %vm816, %v563, 1e+30
    %v881 = vsel %vm817, %v570, 1e+30
    %v882 = vsel %vm818, %v577, 1e+30
    %v883 = vsel %vm819, %v584, 1e+30
    %884 = vst [vmem:[#allocation3] sm:$0xff] %v868
    %885 = vst [vmem:[#allocation3 + $0x8] sm:$0xff] %v869
    %886 = vst [vmem:[#allocation3 + $0x10] sm:$0xff] %v870
    %887 = vst [vmem:[#allocation3 + $0x18] sm:$0xff] %v871
    %888 = vst [vmem:[#allocation3 + $0x20] sm:$0xff] %v872
    %889 = vst [vmem:[#allocation3 + $0x28] sm:$0xff] %v873
    %890 = vst [vmem:[#allocation3 + $0x30] sm:$0xff] %v874
    %891 = vst [vmem:[#allocation3 + $0x38] sm:$0xff] %v875
    %892 = vst [vmem:[#allocation3 + $0x40] sm:$0xff] %v876
    %893 = vst [vmem:[#allocation3 + $0x48] sm:$0xff] %v877
    %894 = vst [vmem:[#allocation3 + $0x50] sm:$0xff] %v878
    %895 = vst [vmem:[#allocation3 + $0x58] sm:$0xff] %v879
    %896 = vst [vmem:[#allocation3 + $0x60] sm:$0xff] %v880
    %897 = vst [vmem:[#allocation3 + $0x68] sm:$0xff] %v881
    %898 = vst [vmem:[#allocation3 + $0x70] sm:$0xff] %v882
    %899 = vst [vmem:[#allocation3 + $0x78] sm:$0xff] %v883
    %v900 = vsel %vm772, 1, 0
    %v901 = vsel %vm773, 1, 0
    %v902 = vsel %vm774, 1, 0
    %v903 = vsel %vm775, 1, 0
    %v904 = vsel %vm776, 1, 0
    %v905 = vsel %vm777, 1, 0
    %v906 = vsel %vm778, 1, 0
    %v907 = vsel %vm779, 1, 0
    %v908 = vsel %vm780, 1, 0
    %v909 = vsel %vm781, 1, 0
    %v910 = vsel %vm782, 1, 0
    %v911 = vsel %vm783, 1, 0
    %v912 = vsel %vm784, 1, 0
    %v913 = vsel %vm785, 1, 0
    %v914 = vsel %vm786, 1, 0
    %v915 = vsel %vm787, 1, 0
    %v916 = vadd.s32 %v900, %v904
    %v917 = vadd.s32 %v901, %v905
    %v918 = vadd.s32 %v902, %v906
    %v919 = vadd.s32 %v903, %v907
    %v920 = vadd.s32 %v916, %v908
    %v921 = vadd.s32 %v917, %v909
    %v922 = vadd.s32 %v918, %v910
    %v923 = vadd.s32 %v919, %v911
    %v924 = vadd.s32 %v920, %v912
    %v925 = vadd.s32 %v921, %v913
    %v926 = vadd.s32 %v922, %v914
    %v927 = vadd.s32 %v923, %v915
    %v928 = vadd.s32 %v924, %v925
    %v929 = vadd.s32 %v926, %v927
    %v930 = vadd.s32 %v928, %v929
    %v931 = vrot.slane %v930, 4
    %v932 = vadd.s32 %v930, %v931
    %v933 = vrot.slane %v932, 2
    %v934 = vadd.s32 %v932, %v933
    %v935 = vrot.slane %v934, 1
    %v936 = vadd.s32 %v934, %v935
    %v937 = vsel %vm804, 1, 0
    %v938 = vsel %vm805, 1, 0
    %v939 = vsel %vm806, 1, 0
    %v940 = vsel %vm807, 1, 0
    %v941 = vsel %vm808, 1, 0
    %v942 = vsel %vm809, 1, 0
    %v943 = vsel %vm810, 1, 0
    %v944 = vsel %vm811, 1, 0
    %v945 = vsel %vm812, 1, 0
    %v946 = vsel %vm813, 1, 0
    %v947 = vsel %vm814, 1, 0
    %v948 = vsel %vm815, 1, 0
    %v949 = vsel %vm816, 1, 0
    %v950 = vsel %vm817, 1, 0
    %v951 = vsel %vm818, 1, 0
    %v952 = vsel %vm819, 1, 0
    %v953 = vadd.s32 %v937, %v941
    %v954 = vadd.s32 %v938, %v942
    %v955 = vadd.s32 %v939, %v943
    %v956 = vadd.s32 %v940, %v944
    %v957 = vadd.s32 %v953, %v945
    %v958 = vadd.s32 %v954, %v946
    %v959 = vadd.s32 %v955, %v947
    %v960 = vadd.s32 %v956, %v948
    %v961 = vadd.s32 %v957, %v949
    %v962 = vadd.s32 %v958, %v950
    %v963 = vadd.s32 %v959, %v951
    %v964 = vadd.s32 %v960, %v952
    %v965 = vadd.s32 %v961, %v962
    %v966 = vadd.s32 %v963, %v964
    %v967 = vadd.s32 %v965, %v966
    %v968 = vrot.slane %v967, 4
    %v969 = vadd.s32 %v967, %v968
    %v970 = vrot.slane %v969, 2
    %v971 = vadd.s32 %v969, %v970
    %v972 = vrot.slane %v971, 1
    %v973 = vadd.s32 %v971, %v972
    loop: start=0, step=1, limit=8
    $region22: #{tpu_custom_call.1} parent=1 // loop_pre_header
      _
    $region23: #{tpu_custom_call.1} parent=1 // loop_header
      %s975 = sphi 0, %s979
      %p976 = scmp.ge.s32.totalorder %s975, 8
      %v980 = vphi 0.0, %v991
      %v981 = vphi 0, %v994
    $region24: #{tpu_custom_call.1} parent=1 // loop_header_branch
      %978 = sbr.rel (%p976) target = $region28
    $region25: #{tpu_custom_call.1} parent=1 // loop_body
      %s982 = scalar_lea.vmem [#allocation2], %s975
      %v983 = vld [vmem:[%s982] sm:$0x1]
      %v984 = vlaneseq
      %v985 = vshrl.u32 %v984, 7
      %v986 = vsub.s32 0, %v985
      %v987 = vrot.slane %v983, %v986
      %v988 = vld [vmem:[#allocation3] sm:$0xff]
      %v989 = vsub.f32 %v987, %v988
      %v990 = vmax.f32 %v989, 0.0
      %v991 = vadd.f32 %v980, %v990
      %vm992 = vcmp.gt.f32.partialorder %v989, 0.0
      %v993 = vsel %vm992, 1, 0
      %v994 = vadd.s32 %v981, %v993
    $region26: #{tpu_custom_call.1} parent=1 // loop_footer
      %s979 = sadd.s32 1, %s975
    $region27: #{tpu_custom_call.1} parent=1 // loop_footer_branch
      %974 = sbr.rel target = $region23
    $region28: #{tpu_custom_call.1} parent=1 // loop_exit
      _
    %995 = vst [vmem:[#allocation4] sm:$0xff] %v980
    %996 = vst [vmem:[#allocation6] sm:$0xff] %v981
    %v997 = vmul.u32 %v936, %v973
    %998 = vst [vmem:[#allocation8] sm:$0x1] %v997
    // Predicated region
    $region29: #{tpu_custom_call.1} parent=1 // pred_check
      _
    $region30: #{tpu_custom_call.1} parent=1 // pred_check_branch
      %1000 = sbr.rel (0) target = $region32
    $region31: #{tpu_custom_call.1} parent=1 // pred_region
      %s1002 = ssub.s32 128, 128
      %1003 = vsyncadd [#allocation5], %s1002
      %s1005 = sshll.u32 [#allocation4], 4
      %s1006 = int_to_ptr.vmem [resolvable:$true] %s1005
      %1008 = dma.vmem_to_hbm [thread:$0]  %s1006, 128, %s5, [#allocation5]
    $region32: #{tpu_custom_call.1} parent=1 // pred_fallthru
      _
    // Predicated region
    $region33: #{tpu_custom_call.1} parent=1 // pred_check
      _
    $region34: #{tpu_custom_call.1} parent=1 // pred_check_branch
      %1010 = sbr.rel (0) target = $region36
    $region35: #{tpu_custom_call.1} parent=1 // pred_region
      %s1012 = ssub.s32 128, 128
      %1013 = vsyncadd [#allocation7], %s1012
      %s1015 = sshll.u32 [#allocation6], 4
      %s1016 = int_to_ptr.vmem [resolvable:$true] %s1015
      %1018 = dma.vmem_to_hbm [thread:$0]  %s1016, 128, %s6, [#allocation7]
    $region36: #{tpu_custom_call.1} parent=1 // pred_fallthru
      _
    // Predicated region
    $region37: #{tpu_custom_call.1} parent=1 // pred_check
      _
    $region38: #{tpu_custom_call.1} parent=1 // pred_check_branch
      %1020 = sbr.rel (0) target = $region40
    $region39: #{tpu_custom_call.1} parent=1 // pred_region
      %s1022 = ssub.s32 16, 16
      %1023 = vsyncadd [#allocation7], %s1022
      %s1025 = sshll.u32 [#allocation8], 4
      %s1026 = int_to_ptr.vmem [resolvable:$true] %s1025
      %1028 = dma.vmem_to_hbm [thread:$0]  %s1026, 16, %s7, [#allocation7]
    $region40: #{tpu_custom_call.1} parent=1 // pred_fallthru
      _
    // Predicated region
    $region41: #{tpu_custom_call.1} parent=1 // pred_check
      _
    $region42: #{tpu_custom_call.1} parent=1 // pred_check_branch
      %1030 = sbr.rel (0) target = $region44
    $region43: #{tpu_custom_call.1} parent=1 // pred_region
      %1031 = dma.done [#allocation5], 128
    $region44: #{tpu_custom_call.1} parent=1 // pred_fallthru
      _
    // Predicated region
    $region45: #{tpu_custom_call.1} parent=1 // pred_check
      _
    $region46: #{tpu_custom_call.1} parent=1 // pred_check_branch
      %1033 = sbr.rel (0) target = $region48
    $region47: #{tpu_custom_call.1} parent=1 // pred_region
      %1034 = dma.done [#allocation7], 128
    $region48: #{tpu_custom_call.1} parent=1 // pred_fallthru
      _
    // Predicated region
    $region49: #{tpu_custom_call.1} parent=1 // pred_check
      _
    $region50: #{tpu_custom_call.1} parent=1 // pred_check_branch
      %1036 = sbr.rel (0) target = $region52
    $region51: #{tpu_custom_call.1} parent=1 // pred_region
      %1037 = dma.done [#allocation7], 16
    $region52: #{tpu_custom_call.1} parent=1 // pred_fallthru
      _
    %1038 = vsyncpa [#allocation5], 1
    %1039 = vsyncpa [#allocation7], 1

</llo_original>
